<compile_context>
chip_gen: v7x
topology: tpu7x:2x2x1
jax: 0.10.0
libtpu: 0.0.40
codegen_flags: <defaults>
</compile_context>

<pallas_src>
import functools
import math

import jax
import jax.numpy as jnp
from jax import lax
from jax.experimental import pallas as pl
from jax.experimental.pallas import tpu as pltpu

_LANES = 128
_SUBLANES = 8
_MAX_BLOCK_ROWS = 2048   # <= 1 MiB f32 per input block
_NEG_PAD = -1e30         # sigmoid(-1e30) == 0 exactly through exp underflow


# ----------------------------------------------------------------------------
# q == 1 : denoise loss (per-sample reduction over all pixels)
# ----------------------------------------------------------------------------
def _denoise_kernel(p_ref, t_ref, out_ref, acc_ref, *, groups):
    k = pl.program_id(2)

    @pl.when(k == 0)
    def _():
        acc_ref[...] = jnp.zeros_like(acc_ref)

    x = p_ref[0].astype(jnp.float32)   # (block_rows, 128)
    t = t_ref[0].astype(jnp.float32)

    # numerically stable sigmoid sharing one EUP exp
    # (padded preds are -1e30 -> e = 0, ps = 0; padded targets are 0, so all
    #  four partial sums stay exact with no mask)
    e = jnp.exp(-jnp.abs(x))
    inv = 1.0 / (1.0 + e)   # exact; pl.reciprocal(approx=True) is a v7x option
    ps = jnp.where(x >= 0, inv, e * inv)

    # sublane-shaped partial sums: only VPU adds per step, no cross-lane work
    pr = ps.reshape(groups, _SUBLANES, _LANES)
    tr = t.reshape(groups, _SUBLANES, _LANES)
    acc_ref[0] += jnp.sum(jnp.abs(pr - tr), axis=0)   # numerator  sum|p - t|
    acc_ref[1] += jnp.sum(pr * tr, axis=0)            # intersection
    acc_ref[2] += jnp.sum(pr, axis=0)                 # sum p
    acc_ref[3] += jnp.sum(tr, axis=0)                 # sum t

    @pl.when(k == pl.num_programs(2) - 1)
    def _():
        out_ref[0, 0] = acc_ref[...]


def denoise_loss(preds, targets):
    """preds: logits (B, ...); targets same shape. Returns scalar mean loss."""
    assert preds.shape == targets.shape
    B = preds.shape[0]
    N = math.prod(preds.shape[1:])
    itemsize = jnp.dtype(preds.dtype).itemsize

    rows = -(-N // _LANES)
    # split rows as evenly as possible into <=_MAX_BLOCK_ROWS blocks; 2-way
    # "parallel" split of the chunk axis keeps both v7x cores busy at B == 1.
    n_splits = 2 if rows >= 2 * _SUBLANES else 1
    num_chunks_total = n_splits * max(1, -(-rows // (n_splits * _MAX_BLOCK_ROWS)))
    block_rows = -(-(-(-rows // num_chunks_total)) // _SUBLANES) * _SUBLANES
    rows_padded = block_rows * num_chunks_total
    chunks_per_split = num_chunks_total // n_splits
    n_pad_elems = rows_padded * _LANES

    pf = preds.reshape(B, N)
    tf = targets.reshape(B, N)
    if n_pad_elems != N:
        # pad preds with a huge negative logit (sigmoid -> 0), targets with 0:
        # no in-kernel mask needed.
        pf = jnp.pad(pf, ((0, 0), (0, n_pad_elems - N)), constant_values=_NEG_PAD)
        tf = jnp.pad(tf, ((0, 0), (0, n_pad_elems - N)))
    p3 = pf.reshape(B, rows_padded, _LANES)
    t3 = tf.reshape(B, rows_padded, _LANES)

    kernel = functools.partial(_denoise_kernel, groups=block_rows // _SUBLANES)
    n_total = B * n_pad_elems

    out = pl.pallas_call(
        kernel,
        out_shape=jax.ShapeDtypeStruct(
            (B, n_splits, 4, _SUBLANES, _LANES), jnp.float32),
        grid_spec=pltpu.PrefetchScalarGridSpec(
            num_scalar_prefetch=0,
            grid=(B, n_splits, chunks_per_split),
            in_specs=[
                pl.BlockSpec((1, block_rows, _LANES),
                             lambda b, s, k: (b, s * chunks_per_split + k, 0)),
                pl.BlockSpec((1, block_rows, _LANES),
                             lambda b, s, k: (b, s * chunks_per_split + k, 0)),
            ],
            out_specs=pl.BlockSpec((1, 1, 4, _SUBLANES, _LANES),
                                   lambda b, s, k: (b, s, 0, 0, 0)),
            scratch_shapes=[pltpu.VMEM((4, _SUBLANES, _LANES), jnp.float32)],
        ),
        compiler_params=pltpu.CompilerParams(
            dimension_semantics=("parallel", "parallel", "arbitrary"),
            vmem_limit_bytes=32 * 1024 * 1024,
        ),
        cost_estimate=pl.CostEstimate(
            flops=int(12 * n_total),
            transcendentals=int(n_total),
            bytes_accessed=int(2 * n_total * itemsize
                               + B * n_splits * 4 * _SUBLANES * _LANES * 4),
        ),
    )(p3, t3)

    # combine per-split / per-sublane / per-lane partial sums -> per-sample loss
    sums = jnp.sum(out, axis=(1, 3, 4))            # (B, 4)
    num, inter, sp, st = sums[:, 0], sums[:, 1], sums[:, 2], sums[:, 3]
    loss = num / (sp + st - inter + 1e-8)
    return jnp.mean(loss)


# ----------------------------------------------------------------------------
# q == 2 : warmup loss (weighted BCE + weighted IoU, one (b, c) image per step)
# ----------------------------------------------------------------------------
def _warmup_kernel(band_h_ref, band_w_ref, p_ref, t_ref, out_ref):
    x = p_ref[0, 0].astype(jnp.float32)   # (H, W) logits
    t = t_ref[0, 0].astype(jnp.float32)   # (H, W) targets
    bh = band_h_ref[...]                  # (H, H) bf16, grid-resident
    bw = band_w_ref[...]                  # (W, W) bf16, grid-resident

    # 31x31 average pool, stride 1, pad 15, count_include_pad=True, as two
    # banded-matrix matmuls on the MXU: pooled = Bh @ (t @ Bw) / 961.
    # bf16 operands, f32 accumulation: exact for binary masks.
    tmp = jnp.dot(t.astype(jnp.bfloat16), bw, preferred_element_type=jnp.float32)
    pooled = jnp.dot(bh, tmp.astype(jnp.bfloat16),
                     preferred_element_type=jnp.float32) * (1.0 / 961.0)
    weit = 1.0 + 5.0 * jnp.abs(pooled - t)

    # stable BCE-with-logits and sigmoid sharing exp(-|x|)
    # (log(1+e) vs log1p(e): <= ~6e-8/element difference, benign for a loss)
    e = jnp.exp(-jnp.abs(x))
    bce = jnp.maximum(x, 0.0) - x * t + jnp.log(1.0 + e)
    inv = 1.0 / (1.0 + e)
    ps = jnp.where(x >= 0, inv, e * inv)

    wbce = jnp.sum(weit * bce) / jnp.sum(weit)
    inter = jnp.sum(weit * ps * t)
    union = jnp.sum(weit * (ps + t))
    wiou = 1.0 - (inter + 1.0) / (union - inter + 1.0)

    out_ref[...] = jnp.full(out_ref.shape, wbce + wiou, out_ref.dtype)


def warmup_loss(preds, targets):
    assert preds.shape == targets.shape
    B, C, H, W = preds.shape
    itemsize = jnp.dtype(preds.dtype).itemsize

    # Band matrices built ONCE (bf16) and kept resident across the whole grid.
    ih = jnp.arange(H)
    iw = jnp.arange(W)
    band_h = (jnp.abs(ih[:, None] - ih[None, :]) <= 15).astype(jnp.bfloat16)
    band_w = (jnp.abs(iw[:, None] - iw[None, :]) <= 15).astype(jnp.bfloat16)

    # Rough per-step VMEM footprint; scale the scoped limit with it but cap at
    # 64 MiB so the request stays legal on v7x (128 MiB physical on v5e/v6e).
    vmem_need = (2 * (H * H + W * W) * 2          # bands (bf16, double-buffered)
                 + 2 * 2 * H * W * itemsize       # preds/targets, double-buffered
                 + 8 * H * W * 4)                 # f32 intermediates
    vmem_limit = int(min(max(32 * 1024 * 1024, 2 * vmem_need), 64 * 1024 * 1024))

    out = pl.pallas_call(
        _warmup_kernel,
        out_shape=jax.ShapeDtypeStruct((B, C, 1, _LANES), jnp.float32),
        grid_spec=pltpu.PrefetchScalarGridSpec(
            num_scalar_prefetch=0,
            grid=(B, C),
            in_specs=[
                pl.BlockSpec((H, H), lambda b, c: (0, 0)),
                pl.BlockSpec((W, W), lambda b, c: (0, 0)),
                pl.BlockSpec((1, 1, H, W), lambda b, c: (b, c, 0, 0)),
                pl.BlockSpec((1, 1, H, W), lambda b, c: (b, c, 0, 0)),
            ],
            out_specs=pl.BlockSpec((1, 1, 1, _LANES), lambda b, c: (b, c, 0, 0)),
        ),
        compiler_params=pltpu.CompilerParams(
            dimension_semantics=("parallel", "parallel"),
            vmem_limit_bytes=vmem_limit,
        ),
        cost_estimate=pl.CostEstimate(
            flops=int(B * C * (2 * H * W * (H + W) + 25 * H * W)),
            transcendentals=int(2 * B * C * H * W),
            bytes_accessed=int(2 * B * C * H * W * itemsize
                               + 2 * (H * H + W * W) + B * C * _LANES * 4),
        ),
    )(band_h, band_w, preds, targets)

    return jnp.mean(out[:, :, 0, 0])


# ----------------------------------------------------------------------------
# forward() equivalent
# ----------------------------------------------------------------------------
def nlss_loss(preds, targets, q):
    if q == 2:
        return warmup_loss(preds, targets)
    if q == 1:
        return denoise_loss(preds, targets) * 2.0
    return None  # mirrors PyTorch forward's implicit None for other q


# ----------------------------------------------------------------------------
# pure-JAX references
# ----------------------------------------------------------------------------
def _ref_warmup(preds, targets):
    p = preds.astype(jnp.float32)
    t = targets.astype(jnp.float32)
    pooled = lax.reduce_window(
        t, 0.0, lax.add, (1, 1, 31, 31), (1, 1, 1, 1),
        ((0, 0), (0, 0), (15, 15), (15, 15)),
    ) / 961.0
    weit = 1.0 + 5.0 * jnp.abs(pooled - t)
    bce = jnp.maximum(p, 0.0) - p * t + jnp.log1p(jnp.exp(-jnp.abs(p)))
    wbce = (weit * bce).sum(axis=(2, 3)) / weit.sum(axis=(2, 3))
    ps = jax.nn.sigmoid(p)
    inter = (ps * t * weit).sum(axis=(2, 3))
    union = ((ps + t) * weit).sum(axis=(2, 3))
    wiou = 1.0 - (inter + 1.0) / (union - inter + 1.0)
    return (wbce + wiou).mean()


def _ref_denoise(preds, targets):
    B = preds.shape[0]
    ps = jax.nn.sigmoid(preds.astype(jnp.float32)).reshape(B, -1)
    t = targets.astype(jnp.float32).reshape(B, -1)
    num = jnp.sum(jnp.abs(ps - t), axis=1)
    inter = jnp.sum(ps * t, axis=1)
    den = jnp.sum(ps, axis=1) + jnp.sum(t, axis=1) - inter + 1e-8
    return (num / den).mean()


def _ref_forward(preds, targets, q):
    if q == 2:
        return _ref_warmup(preds, targets)
    if q == 1:
        return _ref_denoise(preds, targets) * 2.0
    return None


if __name__ == "__main__":
    key = jax.random.PRNGKey(0)
    kp, kt, kp2, kt2 = jax.random.split(key, 4)

    # primary small test shape
    B, C, H, W = 2, 1, 16, 16
    preds = jax.random.normal(kp, (B, C, H, W), dtype=jnp.float32) * 2.0        # logits
    targets = (jax.random.uniform(kt, (B, C, H, W)) > 0.5).astype(jnp.float32)  # binary masks

    out_q1 = nlss_loss(preds, targets, q=1)   # denoise branch
    out_q2 = nlss_loss(preds, targets, q=2)   # warmup branch

    # second shape exercising the lane-padding / 2-way split path (N % 128 != 0)
    B2, C2, H2, W2 = 1, 3, 20, 20
    preds2 = jax.random.normal(kp2, (B2, C2, H2, W2), dtype=jnp.float32) * 2.0
    targets2 = (jax.random.uniform(kt2, (B2, C2, H2, W2)) > 0.5).astype(jnp.float32)
    out2_q1 = nlss_loss(preds2, targets2, q=1)
    out2_q2 = nlss_loss(preds2, targets2, q=2)

    jax.block_until_ready((out_q1, out_q2, out2_q1, out2_q2))

    ref_q1 = _ref_forward(preds, targets, 1)
    ref_q2 = _ref_forward(preds, targets, 2)
    ref2_q1 = _ref_forward(preds2, targets2, 1)
    ref2_q2 = _ref_forward(preds2, targets2, 2)

    assert out_q1.shape == () and out_q2.shape == ()
    assert jnp.allclose(out_q1, ref_q1, atol=1e-5, rtol=1e-4), (out_q1, ref_q1)
    assert jnp.allclose(out_q2, ref_q2, atol=1e-5, rtol=1e-4), (out_q2, ref_q2)
    assert jnp.allclose(out2_q1, ref2_q1, atol=1e-5, rtol=1e-4), (out2_q1, ref2_q1)
    assert jnp.allclose(out2_q2, ref2_q2, atol=1e-5, rtol=1e-4), (out2_q2, ref2_q2)
    print("KERNEL_OK")
</pallas_src>

<mosaic_0001>
module attributes {stable_mosaic.version = 11 : i64} {
  func.func @_denoise_kernel(%arg0: i32, %arg1: i32, %arg2: i32, %arg3: memref<1x8x128xf32, #tpu.memory_space<vmem>>, %arg4: memref<1x8x128xf32, #tpu.memory_space<vmem>>, %arg5: memref<1x1x4x8x128xf32, #tpu.memory_space<vmem>>, %arg6: memref<4x8x128xf32, #tpu.memory_space<vmem>>) attributes {dimension_semantics = [#tpu.dimension_semantics<parallel>, #tpu.dimension_semantics<parallel>, #tpu.dimension_semantics<arbitrary>], iteration_bounds = array<i64: 2, 1, 1>, scalar_prefetch = 0 : i64, scratch_operands = 1 : i64, tpu.core_type = #tpu.core_type<tc>, window_params = [{transform_indices = @transform_0, window_bounds = array<i64: 1, 8, 128>}, {transform_indices = @transform_1, window_bounds = array<i64: 1, 8, 128>}, {transform_indices = @transform_2, window_bounds = array<i64: 1, 1, 4, 8, 128>}]} {
    %c0_i32 = arith.constant 0 : i32
    %0 = arith.cmpi eq, %arg2, %c0_i32 : i32
    %1 = arith.extui %0 : i1 to i32
    %c0_i32_0 = arith.constant 0 : i32
    %2 = arith.cmpi ne, %1, %c0_i32_0 : i32
    scf.if %2 {
      %cst_36 = arith.constant 0.000000e+00 : f32
      %55 = vector.broadcast %cst_36 : f32 to vector<4x8x128xf32>
      %c0_37 = arith.constant 0 : index
      %c0_38 = arith.constant 0 : index
      %c0_39 = arith.constant 0 : index
      %56 = vector.load %arg6[%c0_37, %c0_38, %c0_39] : memref<4x8x128xf32, #tpu.memory_space<vmem>>, vector<4x8x128xf32>
      tpu.vector_store %arg6[%c0_37, %c0_38, %c0_39], %55 {strides = array<i32>} : memref<4x8x128xf32, #tpu.memory_space<vmem>>, vector<4x8x128xf32>,
    } else {
    }
    %c0 = arith.constant 0 : index
    %c0_1 = arith.constant 0 : index
    %c0_2 = arith.constant 0 : index
    %3 = vector.load %arg3[%c0, %c0_1, %c0_2] : memref<1x8x128xf32, #tpu.memory_space<vmem>>, vector<1x8x128xf32>
    %4 = vector.shape_cast %3 : vector<1x8x128xf32> to vector<8x128xf32>
    %c0_3 = arith.constant 0 : index
    %c0_4 = arith.constant 0 : index
    %c0_5 = arith.constant 0 : index
    %5 = vector.load %arg4[%c0_3, %c0_4, %c0_5] : memref<1x8x128xf32, #tpu.memory_space<vmem>>, vector<1x8x128xf32>
    %6 = vector.shape_cast %5 : vector<1x8x128xf32> to vector<8x128xf32>
    %7 = math.absf %4 : vector<8x128xf32>
    %cst = arith.constant 0.000000e+00 : f32
    %8 = vector.broadcast %cst : f32 to vector<8x128xf32>
    %9 = arith.subf %8, %7 : vector<8x128xf32>
    %10 = math.exp %9 : vector<8x128xf32>
    %cst_6 = arith.constant 1.000000e+00 : f32
    %11 = vector.broadcast %cst_6 : f32 to vector<8x128xf32>
    %12 = arith.addf %11, %10 : vector<8x128xf32>
    %cst_7 = arith.constant 1.000000e+00 : f32
    %13 = vector.broadcast %cst_7 : f32 to vector<8x128xf32>
    %14 = arith.divf %13, %12 : vector<8x128xf32>
    %cst_8 = arith.constant 0.000000e+00 : f32
    %15 = vector.broadcast %cst_8 : f32 to vector<8x128xf32>
    %16 = arith.cmpf oge, %4, %15 : vector<8x128xf32>
    %17 = arith.mulf %10, %14 : vector<8x128xf32>
    %18 = arith.select %16, %14, %17 : vector<8x128xi1>, vector<8x128xf32>
    %19 = vector.shape_cast %18 : vector<8x128xf32> to vector<1x8x128xf32>
    %20 = vector.shape_cast %6 : vector<8x128xf32> to vector<1x8x128xf32>
    %c0_9 = arith.constant 0 : index
    %c0_10 = arith.constant 0 : index
    %c0_11 = arith.constant 0 : index
    %21 = vector.load %arg6[%c0_9, %c0_10, %c0_11] : memref<4x8x128xf32, #tpu.memory_space<vmem>>, vector<1x8x128xf32>
    %22 = vector.shape_cast %21 : vector<1x8x128xf32> to vector<8x128xf32>
    %23 = arith.subf %19, %20 : vector<1x8x128xf32>
    %24 = math.absf %23 : vector<1x8x128xf32>
    %cst_12 = arith.constant dense<0.000000e+00> : vector<8x128xf32>
    %25 = vector.multi_reduction <add>, %24, %cst_12 [0] : vector<1x8x128xf32> to vector<8x128xf32>
    %26 = arith.addf %22, %25 : vector<8x128xf32>
    %c0_13 = arith.constant 0 : index
    %c0_14 = arith.constant 0 : index
    %c0_15 = arith.constant 0 : index
    %27 = vector.load %arg6[%c0_13, %c0_14, %c0_15] : memref<4x8x128xf32, #tpu.memory_space<vmem>>, vector<1x8x128xf32>
    %28 = vector.shape_cast %27 : vector<1x8x128xf32> to vector<8x128xf32>
    %29 = vector.shape_cast %26 : vector<8x128xf32> to vector<1x8x128xf32>
    tpu.vector_store %arg6[%c0_13, %c0_14, %c0_15], %29 {strides = array<i32>} : memref<4x8x128xf32, #tpu.memory_space<vmem>>, vector<1x8x128xf32>,
    %c1 = arith.constant 1 : index
    %c0_16 = arith.constant 0 : index
    %c0_17 = arith.constant 0 : index
    %30 = vector.load %arg6[%c1, %c0_16, %c0_17] : memref<4x8x128xf32, #tpu.memory_space<vmem>>, vector<1x8x128xf32>
    %31 = vector.shape_cast %30 : vector<1x8x128xf32> to vector<8x128xf32>
    %32 = arith.mulf %19, %20 : vector<1x8x128xf32>
    %cst_18 = arith.constant dense<0.000000e+00> : vector<8x128xf32>
    %33 = vector.multi_reduction <add>, %32, %cst_18 [0] : vector<1x8x128xf32> to vector<8x128xf32>
    %34 = arith.addf %31, %33 : vector<8x128xf32>
    %c1_19 = arith.constant 1 : index
    %c0_20 = arith.constant 0 : index
    %c0_21 = arith.constant 0 : index
    %35 = vector.load %arg6[%c1_19, %c0_20, %c0_21] : memref<4x8x128xf32, #tpu.memory_space<vmem>>, vector<1x8x128xf32>
    %36 = vector.shape_cast %35 : vector<1x8x128xf32> to vector<8x128xf32>
    %37 = vector.shape_cast %34 : vector<8x128xf32> to vector<1x8x128xf32>
    tpu.vector_store %arg6[%c1_19, %c0_20, %c0_21], %37 {strides = array<i32>} : memref<4x8x128xf32, #tpu.memory_space<vmem>>, vector<1x8x128xf32>,
    %c2 = arith.constant 2 : index
    %c0_22 = arith.constant 0 : index
    %c0_23 = arith.constant 0 : index
    %38 = vector.load %arg6[%c2, %c0_22, %c0_23] : memref<4x8x128xf32, #tpu.memory_space<vmem>>, vector<1x8x128xf32>
    %39 = vector.shape_cast %38 : vector<1x8x128xf32> to vector<8x128xf32>
    %cst_24 = arith.constant dense<0.000000e+00> : vector<8x128xf32>
    %40 = vector.multi_reduction <add>, %19, %cst_24 [0] : vector<1x8x128xf32> to vector<8x128xf32>
    %41 = arith.addf %39, %40 : vector<8x128xf32>
    %c2_25 = arith.constant 2 : index
    %c0_26 = arith.constant 0 : index
    %c0_27 = arith.constant 0 : index
    %42 = vector.load %arg6[%c2_25, %c0_26, %c0_27] : memref<4x8x128xf32, #tpu.memory_space<vmem>>, vector<1x8x128xf32>
    %43 = vector.shape_cast %42 : vector<1x8x128xf32> to vector<8x128xf32>
    %44 = vector.shape_cast %41 : vector<8x128xf32> to vector<1x8x128xf32>
    tpu.vector_store %arg6[%c2_25, %c0_26, %c0_27], %44 {strides = array<i32>} : memref<4x8x128xf32, #tpu.memory_space<vmem>>, vector<1x8x128xf32>,
    %c3 = arith.constant 3 : index
    %c0_28 = arith.constant 0 : index
    %c0_29 = arith.constant 0 : index
    %45 = vector.load %arg6[%c3, %c0_28, %c0_29] : memref<4x8x128xf32, #tpu.memory_space<vmem>>, vector<1x8x128xf32>
    %46 = vector.shape_cast %45 : vector<1x8x128xf32> to vector<8x128xf32>
    %cst_30 = arith.constant dense<0.000000e+00> : vector<8x128xf32>
    %47 = vector.multi_reduction <add>, %20, %cst_30 [0] : vector<1x8x128xf32> to vector<8x128xf32>
    %48 = arith.addf %46, %47 : vector<8x128xf32>
    %c3_31 = arith.constant 3 : index
    %c0_32 = arith.constant 0 : index
    %c0_33 = arith.constant 0 : index
    %49 = vector.load %arg6[%c3_31, %c0_32, %c0_33] : memref<4x8x128xf32, #tpu.memory_space<vmem>>, vector<1x8x128xf32>
    %50 = vector.shape_cast %49 : vector<1x8x128xf32> to vector<8x128xf32>
    %51 = vector.shape_cast %48 : vector<8x128xf32> to vector<1x8x128xf32>
    tpu.vector_store %arg6[%c3_31, %c0_32, %c0_33], %51 {strides = array<i32>} : memref<4x8x128xf32, #tpu.memory_space<vmem>>, vector<1x8x128xf32>,
    %c0_i32_34 = arith.constant 0 : i32
    %52 = arith.cmpi eq, %arg2, %c0_i32_34 : i32
    %53 = arith.extui %52 : i1 to i32
    %c0_i32_35 = arith.constant 0 : i32
    %54 = arith.cmpi ne, %53, %c0_i32_35 : i32
    scf.if %54 {
      %c0_36 = arith.constant 0 : index
      %c0_37 = arith.constant 0 : index
      %c0_38 = arith.constant 0 : index
      %55 = vector.load %arg6[%c0_36, %c0_37, %c0_38] : memref<4x8x128xf32, #tpu.memory_space<vmem>>, vector<4x8x128xf32>
      %c0_39 = arith.constant 0 : index
      %c0_40 = arith.constant 0 : index
      %c0_41 = arith.constant 0 : index
      %c0_42 = arith.constant 0 : index
      %c0_43 = arith.constant 0 : index
      %56 = vector.load %arg5[%c0_39, %c0_40, %c0_41, %c0_42, %c0_43] : memref<1x1x4x8x128xf32, #tpu.memory_space<vmem>>, vector<1x1x4x8x128xf32>
      %57 = vector.shape_cast %56 : vector<1x1x4x8x128xf32> to vector<4x8x128xf32>
      %58 = vector.shape_cast %55 : vector<4x8x128xf32> to vector<1x1x4x8x128xf32>
      tpu.vector_store %arg5[%c0_39, %c0_40, %c0_41, %c0_42, %c0_43], %58 {strides = array<i32>} : memref<1x1x4x8x128xf32, #tpu.memory_space<vmem>>, vector<1x1x4x8x128xf32>,
    } else {
    }
    return
  }
  func.func @transform_0(%arg0: i32, %arg1: i32, %arg2: i32) -> (i32, i32, i32) {
    %c1_i32 = arith.constant 1 : i32
    %0 = arith.muli %arg1, %c1_i32 : i32
    %1 = arith.addi %0, %arg2 : i32
    %c0_i32 = arith.constant 0 : i32
    %c0_i32_0 = arith.constant 0 : i32
    return %arg0, %1, %c0_i32 : i32, i32, i32
  }
  func.func @transform_1(%arg0: i32, %arg1: i32, %arg2: i32) -> (i32, i32, i32) {
    %c1_i32 = arith.constant 1 : i32
    %0 = arith.muli %arg1, %c1_i32 : i32
    %1 = arith.addi %0, %arg2 : i32
    %c0_i32 = arith.constant 0 : i32
    %c0_i32_0 = arith.constant 0 : i32
    return %arg0, %1, %c0_i32 : i32, i32, i32
  }
  func.func @transform_2(%arg0: i32, %arg1: i32, %arg2: i32) -> (i32, i32, i32, i32, i32) {
    %c0_i32 = arith.constant 0 : i32
    %c0_i32_0 = arith.constant 0 : i32
    %c0_i32_1 = arith.constant 0 : i32
    %c0_i32_2 = arith.constant 0 : i32
    return %arg0, %arg1, %c0_i32, %c0_i32_0, %c0_i32_1 : i32, i32, i32, i32, i32
  }
}

</mosaic_0001>

<llo_original>
// kernel: tpu_custom_call.1
$region0: #{tpu_custom_call.1}
  #allocation0 [shape = 'u32[]', space=smem, size = 0x4, offset = 0x4, fixed_abs, tag = 'smem constant byte address 0x4 - core index']
  #allocation1 [shape = 'u32[144,128]{1,0:T(1,128)}', space=vmem, size = 0x12000, scoped, tag = 'internal scratch']
  #allocation2 [shape = 'f32[4,8,128]{2,1,0:T(8,128)}', space=vmem, size = 0x4000, scoped, tag = 'scratch operand']
  %s0 = inlined_call_operand.hbm [shape: f32[2,8,128], index: 0, kind: input, shape index: {}]
  %s1 = inlined_call_operand.hbm [shape: f32[2,8,128], index: 1, kind: input, shape index: {}]
  %s2 = inlined_call_operand.hbm [shape: f32[2,1,4,8,128], index: 2, kind: output, shape index: {}]
  %s3 = sld [smem:[#allocation0]]
  $region57: #{tpu_custom_call.1} parent=0
    _
  %s5 = ssub.s32 1, %s3
  %s6 = scalar_select 0, %s5, %s3
  $region1: #{tpu_custom_call.1} parent=0
    #allocation3 [shape = 'u8[8192]{0}', space=vmem, size = 0x2000, scoped, tag = 'input window, operand 0']
    #allocation4 [shape = 's32[2]{0}', space=sflag, size = 0x8, scoped, tag = 'scoped memory for tpu_custom_call.1']
    #allocation5 [shape = 's32[2]{0}', space=sflag, size = 0x8, scoped, tag = 'scoped memory for tpu_custom_call.1']
    #allocation6 [shape = 'u8[8192]{0}', space=vmem, size = 0x2000, scoped, tag = 'input window, operand 1']
    #allocation7 [shape = 's32[2]{0}', space=sflag, size = 0x8, scoped, tag = 'scoped memory for tpu_custom_call.1']
    #allocation8 [shape = 'u8[32768]{0}', space=vmem, size = 0x8000, scoped, tag = 'output window, operand 0']
    %7 = vsyncpa [#allocation4], 0
    %s8 = scalar_lea.sflag [#allocation4], 1
    %9 = vsyncpa %s8, 0
    %10 = vsyncpa [#allocation7], 0
    %s11 = scalar_lea.sflag [#allocation7], 1
    %12 = vsyncpa %s11, 0
    %13 = vsyncpa [#allocation5], 0
    %s14 = scalar_lea.sflag [#allocation5], 1
    %15 = vsyncpa %s14, 0
    loop: start=0, step=1, limit=4
    $region2: #{tpu_custom_call.1} parent=1 // loop_pre_header
      _
    $region3: #{tpu_custom_call.1} parent=1 // loop_header
      %s17 = sphi 0, %s21
      %p18 = scmp.ge.s32.totalorder %s17, 4
      %s24 = sphi 0, %s43
      %s25 = sphi 0, %s39
      %s26 = sphi 0, %s35
      %s27 = sphi 0, %s24
      %s28 = sphi 0, %s25
      %s29 = sphi 0, %s26
      %s30 = sphi 0, %s27
      %s31 = sphi 0, %s28
      %s32 = sphi 0, %s29
      %s50 = sphi 0, %s52
      %s53 = sphi 0, %s50
      %s54 = sphi 0, %s53
      %s70 = sphi 0, %s54
      %s80 = sphi 0, %s82
      %s83 = sphi 0, %s80
      %s84 = sphi 0, %s83
      %s100 = sphi 0, %s84
      %s108 = sphi 0, %s110
      %s111 = sphi 0, %s108
      %s112 = sphi 0, %s111
      %s128 = sphi 0, %s112
    $region4: #{tpu_custom_call.1} parent=1 // loop_header_branch
      %20 = sbr.rel (%p18) target = $region8
    $region5: #{tpu_custom_call.1} parent=1 // loop_body
      %s22 = ssub.s32 %s17, 1
      %s23 = ssub.s32 %s17, 2
      %s33 = sadd.s32 1, %s26
      %p34 = scmp.ge.s32.totalorder %s33, 1
      %s35 = scalar_select %p34, 0, %s33
      %s36 = sadd.s32 1, %s25
      %s37 = scalar_select %p34, %s36, %s25
      %p38 = scmp.ge.s32.totalorder %s37, 1
      %s39 = scalar_select %p38, 0, %s37
      %s40 = sadd.s32 1, %s24
      %s41 = scalar_select %p38, %s40, %s24
      %p42 = scmp.ge.s32.totalorder %s41, 2
      %s43 = scalar_select %p42, 0, %s41
      %s44 = sadd.s32 %s25, %s26
      %s45 = sadd.s32 %s39, %s35
      %s46 = ssub.s32 %s24, %s43
      %s47 = ssub.s32 %s44, %s45
      %s48 = sor.u32 %s46, %s47
      %p49 = scmp.eq.s32.totalorder %s48, 0
      %s51 = sadd.s32 %s50, 1
      %s52 = scalar_select %p49, %s50, %s51
      %p55 = pneg %p49
      %p56 = scmp.eq.s32.totalorder %s17, 1
      %p57 = por %p55, %p56
      %p58 = scmp.ne.s32.totalorder %s50, %s53
      %p59 = scmp.eq.s32.totalorder %s17, 0
      %p60 = por %p58, %p59
      %p61 = scmp.ne.s32.totalorder %s50, %s53
      %p62 = scmp.eq.s32.totalorder %s22, 1
      %p63 = por %p61, %p62
      %p64 = scmp.ne.s32.totalorder %s53, %s54
      %p65 = scmp.eq.s32.totalorder %s22, 0
      %p66 = por %p64, %p65
      %p67 = scmp.ne.s32.totalorder %s53, %s54
      %p68 = scmp.eq.s32.totalorder %s23, 1
      %p69 = por %p67, %p68
      %p71 = scmp.ne.s32.totalorder %s54, %s70
      %p72 = scmp.eq.s32.totalorder %s23, 0
      %p73 = por %p71, %p72
      %s74 = sadd.s32 %s25, %s26
      %s75 = sadd.s32 %s39, %s35
      %s76 = ssub.s32 %s24, %s43
      %s77 = ssub.s32 %s74, %s75
      %s78 = sor.u32 %s76, %s77
      %p79 = scmp.eq.s32.totalorder %s78, 0
      %s81 = sadd.s32 %s80, 1
      %s82 = scalar_select %p79, %s80, %s81
      %p85 = pneg %p79
      %p86 = scmp.eq.s32.totalorder %s17, 1
      %p87 = por %p85, %p86
      %p88 = scmp.ne.s32.totalorder %s80, %s83
      %p89 = scmp.eq.s32.totalorder %s17, 0
      %p90 = por %p88, %p89
      %p91 = scmp.ne.s32.totalorder %s80, %s83
      %p92 = scmp.eq.s32.totalorder %s22, 1
      %p93 = por %p91, %p92
      %p94 = scmp.ne.s32.totalorder %s83, %s84
      %p95 = scmp.eq.s32.totalorder %s22, 0
      %p96 = por %p94, %p95
      %p97 = scmp.ne.s32.totalorder %s83, %s84
      %p98 = scmp.eq.s32.totalorder %s23, 1
      %p99 = por %p97, %p98
      %p101 = scmp.ne.s32.totalorder %s84, %s100
      %p102 = scmp.eq.s32.totalorder %s23, 0
      %p103 = por %p101, %p102
      %s104 = ssub.s32 %s24, %s43
      %s105 = ssub.s32 %s25, %s39
      %s106 = sor.u32 %s104, %s105
      %p107 = scmp.eq.s32.totalorder %s106, 0
      %s109 = sadd.s32 %s108, 1
      %s110 = scalar_select %p107, %s108, %s109
      %p113 = pneg %p107
      %p114 = scmp.eq.s32.totalorder %s17, 1
      %p115 = por %p113, %p114
      %p116 = scmp.ne.s32.totalorder %s108, %s111
      %p117 = scmp.eq.s32.totalorder %s17, 0
      %p118 = por %p116, %p117
      %p119 = scmp.ne.s32.totalorder %s108, %s111
      %p120 = scmp.eq.s32.totalorder %s22, 1
      %p121 = por %p119, %p120
      %p122 = scmp.ne.s32.totalorder %s111, %s112
      %p123 = scmp.eq.s32.totalorder %s22, 0
      %p124 = por %p122, %p123
      %p125 = scmp.ne.s32.totalorder %s111, %s112
      %p126 = scmp.eq.s32.totalorder %s23, 1
      %p127 = por %p125, %p126
      %p129 = scmp.ne.s32.totalorder %s112, %s128
      %p130 = scmp.eq.s32.totalorder %s23, 0
      %p131 = por %p129, %p130
      %p132 = scmp.le.s32.totalorder 1, %s17
      %p133 = scmp.lt.s32.totalorder %s17, 3
      %p134 = pnand %p132, %p133
      %p135 = pneg %p134
      // Predicated region
      $region9: #{tpu_custom_call.1} parent=5 // pred_check
        _
      $region10: #{tpu_custom_call.1} parent=5 // pred_check_branch
        %137 = sbr.rel (%p134) target = $region12
      $region11: #{tpu_custom_call.1} parent=5 // pred_region
        %s138 = ssub.s32 %s17, 1
      $region12: #{tpu_custom_call.1} parent=5 // pred_fallthru
        _
      %p139 = scmp.lt.s32.totalorder %s17, 2
      // Predicated region
      $region13: #{tpu_custom_call.1} parent=5 // pred_check
        %p140 = pneg %p139
      $region14: #{tpu_custom_call.1} parent=5 // pred_check_branch
        %142 = sbr.rel (%p140) target = $region16
      $region15: #{tpu_custom_call.1} parent=5 // pred_region
        // Predicated region
        $region17: #{tpu_custom_call.1} parent=15 // pred_check
          %p143 = pneg %p60
        $region18: #{tpu_custom_call.1} parent=15 // pred_check_branch
          %145 = sbr.rel (%p143) target = $region20
        $region19: #{tpu_custom_call.1} parent=15 // pred_region
          %s146 = sand.u32 %s50, 1
          %s147 = scalar_lea.sflag [#allocation4], %s146
          %s148 = sand.u32 %s50, 1
          %s149 = smul.addr %s148, 8
          %s150 = scalar_lea.vmem [#allocation3], %s149
          %s151 = sadd.s32 %s25, %s26
          %s153 = ssub.s32 128, 128
          %154 = vsyncadd %s147, %s153
          %s155 = sadd.s32 %s151, %s24
          %s156 = smul.addr %s155, 128
          %s157 = scalar_lea.hbm %s0, %s156
          %s159 = sshll.u32 %s150, 4
          %s160 = int_to_ptr.vmem [resolvable:$true] %s159
          %162 = dma.hbm_to_vmem [thread:$0]  %s157, 128, %s160, %s147
        $region20: #{tpu_custom_call.1} parent=15 // pred_fallthru
          _
        // Predicated region
        $region21: #{tpu_custom_call.1} parent=15 // pred_check
          %p163 = pneg %p90
        $region22: #{tpu_custom_call.1} parent=15 // pred_check_branch
          %165 = sbr.rel (%p163) target = $region24
        $region23: #{tpu_custom_call.1} parent=15 // pred_region
          %s166 = sand.u32 %s80, 1
          %s167 = scalar_lea.sflag [#allocation7], %s166
          %s168 = sand.u32 %s80, 1
          %s169 = smul.addr %s168, 8
          %s170 = scalar_lea.vmem [#allocation6], %s169
          %s171 = sadd.s32 %s25, %s26
          %s173 = ssub.s32 128, 128
          %174 = vsyncadd %s167, %s173
          %s175 = sadd.s32 %s171, %s24
          %s176 = smul.addr %s175, 128
          %s177 = scalar_lea.hbm %s1, %s176
          %s179 = sshll.u32 %s170, 4
          %s180 = int_to_ptr.vmem [resolvable:$true] %s179
          %182 = dma.hbm_to_vmem [thread:$0]  %s177, 128, %s180, %s167
        $region24: #{tpu_custom_call.1} parent=15 // pred_fallthru
          _
      $region16: #{tpu_custom_call.1} parent=5 // pred_fallthru
        _
      %p183 = scmp.le.s32.totalorder 1, %s17
      %p184 = scmp.lt.s32.totalorder %s17, 3
      %p185 = pnand %p183, %p184
      %p186 = pneg %p185
      // Predicated region
      $region25: #{tpu_custom_call.1} parent=5 // pred_check
        _
      $region26: #{tpu_custom_call.1} parent=5 // pred_check_branch
        %188 = sbr.rel (%p185) target = $region28
      $region27: #{tpu_custom_call.1} parent=5 // pred_region
        %s189 = ssub.s32 %s17, 1
        %s190 = sand.u32 %s53, 1
        %s191 = scalar_lea.sflag [#allocation4], %s190
        %s192 = sand.u32 %s53, 1
        %s193 = smul.addr %s192, 8
        %s194 = scalar_lea.vmem [#allocation3], %s193
        // Predicated region
        $region29: #{tpu_custom_call.1} parent=27 // pred_check
          %p195 = pneg %p66
        $region30: #{tpu_custom_call.1} parent=27 // pred_check_branch
          %197 = sbr.rel (%p195) target = $region32
        $region31: #{tpu_custom_call.1} parent=27 // pred_region
          %198 = dma.done %s191, 128
        $region32: #{tpu_custom_call.1} parent=27 // pred_fallthru
          _
        %s199 = sand.u32 %s83, 1
        %s200 = scalar_lea.sflag [#allocation7], %s199
        %s201 = sand.u32 %s83, 1
        %s202 = smul.addr %s201, 8
        %s203 = scalar_lea.vmem [#allocation6], %s202
        // Predicated region
        $region33: #{tpu_custom_call.1} parent=27 // pred_check
          %p204 = pneg %p96
        $region34: #{tpu_custom_call.1} parent=27 // pred_check_branch
          %206 = sbr.rel (%p204) target = $region36
        $region35: #{tpu_custom_call.1} parent=27 // pred_region
          %207 = dma.done %s200, 128
        $region36: #{tpu_custom_call.1} parent=27 // pred_fallthru
          _
        %s208 = sand.u32 %s53, 1
        %s209 = scalar_lea.sflag [#allocation4], %s208
        %s210 = sand.u32 %s53, 1
        %s211 = smul.addr %s210, 8
        %s212 = scalar_lea.vmem [#allocation3], %s211
        %p213 = pneg %p66
        %p214 = pneg %p63
        %s215 = sand.u32 %s83, 1
        %s216 = scalar_lea.sflag [#allocation7], %s215
        %s217 = sand.u32 %s83, 1
        %s218 = smul.addr %s217, 8
        %s219 = scalar_lea.vmem [#allocation6], %s218
        %p220 = pneg %p96
        %p221 = pneg %p93
        %p222 = pneg %p124
        %p223 = pneg %p121
        %s224 = sand.u32 %s111, 1
        %s225 = scalar_lea.sflag [#allocation5], %s224
        %s226 = sand.u32 %s111, 1
        %s227 = smul.addr %s226, 32
        %s228 = scalar_lea.vmem [#allocation8], %s227
        %s229 = sadd.s32 %s28, %s29
        %s230 = sadd.s32 %s28, %s29
        %p231 = scmp.eq.s32.totalorder %s29, 0
        // Predicated region
        $region37: #{tpu_custom_call.1} parent=27 // pred_check
          %p232 = pneg %p231
        $region38: #{tpu_custom_call.1} parent=27 // pred_check_branch
          %234 = sbr.rel (%p232) target = $region40
        $region39: #{tpu_custom_call.1} parent=27 // pred_region
          %235 = vst [vmem:[#allocation2] sm:$0xff] 0.0
          %236 = vst [vmem:[#allocation2 + $0x8] sm:$0xff] 0.0
          %237 = vst [vmem:[#allocation2 + $0x10] sm:$0xff] 0.0
          %238 = vst [vmem:[#allocation2 + $0x18] sm:$0xff] 0.0
        $region40: #{tpu_custom_call.1} parent=27 // pred_fallthru
          _
        %v239 = vld [vmem:[%s194] sm:$0xff]
        %v240 = vld [vmem:[%s203] sm:$0xff]
        %v241 = vand.u32 2147483647, %v239
        %v242 = vsub.f32 0.0, %v241
        %v243 = vmul.f32 %v242, 1.442695
        %v244 = vpow.pop %v243
        %v245 = vadd.f32 %v244, 1.0
        %v246 = vrcp.pop %v245
        %v247 = vmul.f32 1.0, %v246
        %vm248 = vcmp.ge.f32.partialorder %v239, 0.0
        %v249 = vmul.f32 %v244, %v247
        %v250 = vsel %vm248, %v247, %v249
        %v251 = vld [vmem:[#allocation2] sm:$0xff]
        %v252 = vsub.f32 %v250, %v240
        %v253 = vand.u32 2147483647, %v252
        %v254 = vadd.f32 %v253, 0.0
        %v255 = vadd.f32 %v251, %v254
        %256 = vst [vmem:[#allocation2] sm:$0xff] %v255
        %s257 = scalar_lea.vmem [#allocation2], 8
        %v258 = vld [vmem:[%s257] sm:$0xff]
        %v259 = vmul.f32 %v250, %v240
        %v260 = vadd.f32 %v259, 0.0
        %v261 = vadd.f32 %v258, %v260
        %262 = vst [vmem:[%s257] sm:$0xff] %v261
        %s263 = scalar_lea.vmem [#allocation2], 16
        %v264 = vld [vmem:[%s263] sm:$0xff]
        %v265 = vadd.f32 %v250, 0.0
        %v266 = vadd.f32 %v264, %v265
        %267 = vst [vmem:[%s263] sm:$0xff] %v266
        %s268 = scalar_lea.vmem [#allocation2], 24
        %v269 = vld [vmem:[%s268] sm:$0xff]
        %v270 = vadd.f32 %v240, 0.0
        %v271 = vadd.f32 %v269, %v270
        %272 = vst [vmem:[%s268] sm:$0xff] %v271
        // Predicated region
        $region41: #{tpu_custom_call.1} parent=27 // pred_check
          %p273 = pneg %p231
        $region42: #{tpu_custom_call.1} parent=27 // pred_check_branch
          %275 = sbr.rel (%p273) target = $region44
        $region43: #{tpu_custom_call.1} parent=27 // pred_region
          %v276 = vld [vmem:[#allocation2] sm:$0xff]
          %v277 = vld [vmem:[#allocation2 + $0x8] sm:$0xff]
          %v278 = vld [vmem:[#allocation2 + $0x10] sm:$0xff]
          %v279 = vld [vmem:[#allocation2 + $0x18] sm:$0xff]
          %280 = vst [vmem:[%s228] sm:$0xff] %v276
          %281 = vst [vmem:[%s228 + $0x8] sm:$0xff] %v277
          %282 = vst [vmem:[%s228 + $0x10] sm:$0xff] %v278
          %283 = vst [vmem:[%s228 + $0x18] sm:$0xff] %v279
        $region44: #{tpu_custom_call.1} parent=27 // pred_fallthru
          _
        %s284 = sand.u32 %s111, 1
        %s285 = scalar_lea.sflag [#allocation5], %s284
        %s286 = sand.u32 %s111, 1
        %s287 = smul.addr %s286, 32
        %s288 = scalar_lea.vmem [#allocation8], %s287
        // Predicated region
        $region45: #{tpu_custom_call.1} parent=27 // pred_check
          %p289 = pneg %p121
        $region46: #{tpu_custom_call.1} parent=27 // pred_check_branch
          %291 = sbr.rel (%p289) target = $region48
        $region47: #{tpu_custom_call.1} parent=27 // pred_region
          %s293 = ssub.s32 512, 512
          %294 = vsyncadd %s285, %s293
          %s295 = smul.addr %s28, 4
          %s296 = smul.addr %s27, 4
          %s297 = sadd.s32 %s295, %s296
          %s298 = smul.addr %s297, 128
          %s299 = scalar_lea.hbm %s2, %s298
          %s300 = sshll.u32 %s288, 4
          %s301 = int_to_ptr.vmem [resolvable:$true] %s300
          %306 = dma.vmem_to_hbm [thread:$0]  %s301, 512, %s299, %s285, 128, 128, 8
        $region48: #{tpu_custom_call.1} parent=27 // pred_fallthru
          _
      $region28: #{tpu_custom_call.1} parent=5 // pred_fallthru
        _
      %p307 = scmp.le.s32.totalorder 2, %s17
      // Predicated region
      $region49: #{tpu_custom_call.1} parent=5 // pred_check
        %p308 = pneg %p307
      $region50: #{tpu_custom_call.1} parent=5 // pred_check_branch
        %310 = sbr.rel (%p308) target = $region52
      $region51: #{tpu_custom_call.1} parent=5 // pred_region
        %s311 = ssub.s32 %s17, 2
        // Predicated region
        $region53: #{tpu_custom_call.1} parent=51 // pred_check
          %p312 = pneg %p127
        $region54: #{tpu_custom_call.1} parent=51 // pred_check_branch
          %314 = sbr.rel (%p312) target = $region56
        $region55: #{tpu_custom_call.1} parent=51 // pred_region
          %s315 = sand.u32 %s112, 1
          %s316 = scalar_lea.sflag [#allocation5], %s315
          %s317 = sand.u32 %s112, 1
          %s318 = smul.addr %s317, 32
          %s319 = scalar_lea.vmem [#allocation8], %s318
          %320 = dma.done %s316, 512
        $region56: #{tpu_custom_call.1} parent=51 // pred_fallthru
          _
      $region52: #{tpu_custom_call.1} parent=5 // pred_fallthru
        _
    $region6: #{tpu_custom_call.1} parent=1 // loop_footer
      %s21 = sadd.s32 1, %s17
    $region7: #{tpu_custom_call.1} parent=1 // loop_footer_branch
      %16 = sbr.rel target = $region3
    $region8: #{tpu_custom_call.1} parent=1 // loop_exit
      _
    %321 = vsyncpa [#allocation4], 1
    %s322 = scalar_lea.sflag [#allocation4], 1
    %323 = vsyncpa %s322, 1
    %324 = vsyncpa [#allocation7], 1
    %s325 = scalar_lea.sflag [#allocation7], 1
    %326 = vsyncpa %s325, 1
    %327 = vsyncpa [#allocation5], 1
    %s328 = scalar_lea.sflag [#allocation5], 1
    %329 = vsyncpa %s328, 1

</llo_original>
